<compile_context>
chip_gen: v7x
topology: tpu7x:2x2x1
jax: 0.10.0
libtpu: 0.0.40
codegen_flags: <defaults>
</compile_context>

<pallas_src>
import jax
import jax.numpy as jnp
from jax import lax
from jax.experimental import pallas as pl
from jax.experimental.pallas import tpu as pltpu


def critic_kernel(x_ref, w1_ref, b1_ref, w2_ref, b2_ref, o_ref):
    # x_ref : (TB, in)        bf16   (batch tile)
    # w1_ref: (hidden, in)    bf16   (PyTorch layout, resident)
    # b1_ref: (1, hidden)     f32    (resident)
    # w2_ref: (out_p, hidden) bf16   (PyTorch layout, padded to 128 lanes, resident)
    # b2_ref: (1, out_p)      f32    (resident)
    # o_ref : (TB, out_p)     f32
    x = x_ref[...]

    # linear1: contract x dim 1 with w1 dim 1 (== x @ w1.T) with f32 accumulation.
    h = lax.dot_general(
        x, w1_ref[...],
        dimension_numbers=(((1,), (1,)), ((), ())),
        preferred_element_type=jnp.float32,
    )
    h = jnp.maximum(h + b1_ref[...], 0.0)           # bias + ReLU in f32 on the VPU

    # linear2: cast activations back to bf16 for the MXU, accumulate in f32.
    y = lax.dot_general(
        h.astype(w2_ref.dtype), w2_ref[...],
        dimension_numbers=(((1,), (1,)), ((), ())),
        preferred_element_type=jnp.float32,
    )
    o_ref[...] = (y + b2_ref[...]).astype(o_ref.dtype)


def prepare_critic_params(w1, b1, w2, b2, *, compute_dtype=jnp.bfloat16, lane=128):
    """One-time parameter prep (weight-stationary inference).

    Keeps PyTorch (out_features, in_features) layout (no transposes), casts
    weights to bf16, keeps biases in f32, and pads the output dimension of the
    second layer to a multiple of 128 so kernel stores are lane-dense."""
    hidden = w1.shape[0]
    out = w2.shape[0]
    out_p = ((out + lane - 1) // lane) * lane

    w2_p = jnp.zeros((out_p, hidden), w2.dtype).at[:out].set(w2)
    b2_p = jnp.zeros((out_p,), b2.dtype).at[:out].set(b2)

    return {
        "w1": w1.astype(compute_dtype),                       # (hidden, in)
        "b1": b1.reshape(1, hidden).astype(jnp.float32),      # (1, hidden)
        "w2": w2_p.astype(compute_dtype),                     # (out_p, hidden)
        "b2": b2_p.reshape(1, out_p).astype(jnp.float32),     # (1, out_p)
        "out_size": out,
    }


def critic_forward(x, params, *, batch_tile=512):
    """x: (B, input_size).  Returns (B, output_size) float32."""
    B, in_size = x.shape
    w1, b1, w2, b2 = params["w1"], params["b1"], params["w2"], params["b2"]
    hidden = w1.shape[0]
    out_p = w2.shape[0]
    out_size = params["out_size"]

    x = x.astype(w1.dtype)  # bf16 activations (weights already cast at prep time)

    # Batch tile: full batch if small, otherwise 512-row tiles (multiple of the
    # bf16 sublane pack of 16; large enough to amortize ~600-cycle step overhead
    # while the resident weights + double-buffered x/out tiles stay far below the
    # 64 MiB v7x VMEM budget at these layer sizes).
    TB = B if B <= batch_tile else batch_tile
    grid = (pl.cdiv(B, TB),)

    y_padded = pl.pallas_call(
        critic_kernel,
        out_shape=jax.ShapeDtypeStruct((B, out_p), jnp.float32),
        grid=grid,
        in_specs=[
            pl.BlockSpec((TB, in_size), lambda i: (i, 0)),       # x: streamed per tile
            pl.BlockSpec((hidden, in_size), lambda i: (0, 0)),   # w1: resident
            pl.BlockSpec((1, hidden), lambda i: (0, 0)),         # b1: resident
            pl.BlockSpec((out_p, hidden), lambda i: (0, 0)),     # w2: resident
            pl.BlockSpec((1, out_p), lambda i: (0, 0)),          # b2: resident
        ],
        out_specs=pl.BlockSpec((TB, out_p), lambda i: (i, 0)),
        compiler_params=pltpu.CompilerParams(
            dimension_semantics=("parallel",),
        ),
    )(x, w1, b1, w2, b2)

    # Slice back to the true head width (kernel side stays lane-dense).
    return y_padded[:, :out_size]


def init_critic_params(key, input_size, output_size, hidden_size, dtype=jnp.float32):
    # PyTorch Linear default init: U(-1/sqrt(fan_in), 1/sqrt(fan_in)).
    k1, k2, k3, k4 = jax.random.split(key, 4)
    bound1 = 1.0 / (input_size ** 0.5)
    bound2 = 1.0 / (hidden_size ** 0.5)
    w1 = jax.random.uniform(k1, (hidden_size, input_size), dtype, -bound1, bound1)
    b1 = jax.random.uniform(k2, (hidden_size,), dtype, -bound1, bound1)
    w2 = jax.random.uniform(k3, (output_size, hidden_size), dtype, -bound2, bound2)
    b2 = jax.random.uniform(k4, (output_size,), dtype, -bound2, bound2)
    return w1, b1, w2, b2


if __name__ == "__main__":
    key = jax.random.PRNGKey(0)
    kx, kp = jax.random.split(key)

    batch = 8
    input_size = 16
    hidden_size = 32
    output_size = 4

    x = jax.random.normal(kx, (batch, input_size), jnp.float32)
    w1, b1, w2, b2 = init_critic_params(kp, input_size, output_size, hidden_size)

    params = prepare_critic_params(w1, b1, w2, b2)   # one-time weight prep
    out = jax.block_until_ready(critic_forward(x, params))

    # Pure-JAX f32 reference (same math as the PyTorch forward); bf16 MXU inputs
    # with f32 accumulation -> relaxed tolerance.
    ref = jnp.maximum(x @ w1.T + b1, 0.0) @ w2.T + b2
    assert out.shape == (batch, output_size)
    assert jnp.allclose(out, ref, atol=2e-2, rtol=2e-2), float(jnp.max(jnp.abs(out - ref)))

    print("KERNEL_OK")
</pallas_src>

<mosaic_0001>
module attributes {stable_mosaic.version = 11 : i64} {
  func.func @critic_kernel(%arg0: i32, %arg1: memref<8x16xbf16, #tpu.memory_space<vmem>>, %arg2: memref<32x16xbf16, #tpu.memory_space<vmem>>, %arg3: memref<1x32xf32, #tpu.memory_space<vmem>>, %arg4: memref<128x32xbf16, #tpu.memory_space<vmem>>, %arg5: memref<1x128xf32, #tpu.memory_space<vmem>>, %arg6: memref<8x128xf32, #tpu.memory_space<vmem>>) attributes {dimension_semantics = [#tpu.dimension_semantics<parallel>], iteration_bounds = array<i64: 1>, scalar_prefetch = 0 : i64, scratch_operands = 0 : i64, tpu.core_type = #tpu.core_type<tc>, window_params = [{transform_indices = @transform_0, window_bounds = array<i64: 8, 16>}, {pipeline_mode = #tpu.pipeline_mode<synchronous>, transform_indices = @transform_1, window_bounds = array<i64: 32, 16>}, {pipeline_mode = #tpu.pipeline_mode<synchronous>, transform_indices = @transform_2, window_bounds = array<i64: 1, 32>}, {pipeline_mode = #tpu.pipeline_mode<synchronous>, transform_indices = @transform_3, window_bounds = array<i64: 128, 32>}, {pipeline_mode = #tpu.pipeline_mode<synchronous>, transform_indices = @transform_4, window_bounds = array<i64: 1, 128>}, {transform_indices = @transform_5, window_bounds = array<i64: 8, 128>}]} {
    %c0 = arith.constant 0 : index
    %c0_0 = arith.constant 0 : index
    %0 = vector.load %arg1[%c0, %c0_0] : memref<8x16xbf16, #tpu.memory_space<vmem>>, vector<8x16xbf16>
    %c0_1 = arith.constant 0 : index
    %c0_2 = arith.constant 0 : index
    %1 = vector.load %arg2[%c0_1, %c0_2] : memref<32x16xbf16, #tpu.memory_space<vmem>>, vector<32x16xbf16>
    %cst = arith.constant dense<0.000000e+00> : vector<8x32xf32>
    %2 = tpu.matmul %0, %1, %cst {dimension_numbers = #tpu.dot_dimension_numbers<[1], [1], [0], [0], [0, 0, 1, 0], [], []>} : vector<8x16xbf16>, vector<32x16xbf16>, vector<8x32xf32> -> vector<8x32xf32>
    %c0_3 = arith.constant 0 : index
    %c0_4 = arith.constant 0 : index
    %3 = vector.load %arg3[%c0_3, %c0_4] : memref<1x32xf32, #tpu.memory_space<vmem>>, vector<1x32xf32>
    %4 = vector.broadcast %3 : vector<1x32xf32> to vector<8x32xf32>
    %5 = arith.addf %2, %4 : vector<8x32xf32>
    %cst_5 = arith.constant 0.000000e+00 : f32
    %6 = vector.broadcast %cst_5 : f32 to vector<8x32xf32>
    %7 = arith.maximumf %5, %6 : vector<8x32xf32>
    %8 = arith.truncf %7 : vector<8x32xf32> to vector<8x32xbf16>
    %c0_6 = arith.constant 0 : index
    %c0_7 = arith.constant 0 : index
    %9 = vector.load %arg4[%c0_6, %c0_7] : memref<128x32xbf16, #tpu.memory_space<vmem>>, vector<128x32xbf16>
    %cst_8 = arith.constant dense<0.000000e+00> : vector<8x128xf32>
    %10 = tpu.matmul %8, %9, %cst_8 {dimension_numbers = #tpu.dot_dimension_numbers<[1], [1], [0], [0], [0, 0, 1, 0], [], []>} : vector<8x32xbf16>, vector<128x32xbf16>, vector<8x128xf32> -> vector<8x128xf32>
    %c0_9 = arith.constant 0 : index
    %c0_10 = arith.constant 0 : index
    %11 = vector.load %arg5[%c0_9, %c0_10] : memref<1x128xf32, #tpu.memory_space<vmem>>, vector<1x128xf32>
    %12 = vector.broadcast %11 : vector<1x128xf32> to vector<8x128xf32>
    %13 = arith.addf %10, %12 : vector<8x128xf32>
    %c0_11 = arith.constant 0 : index
    %c0_12 = arith.constant 0 : index
    %14 = vector.load %arg6[%c0_11, %c0_12] : memref<8x128xf32, #tpu.memory_space<vmem>>, vector<8x128xf32>
    tpu.vector_store %arg6[%c0_11, %c0_12], %13 {strides = array<i32>} : memref<8x128xf32, #tpu.memory_space<vmem>>, vector<8x128xf32>,
    return
  }
  func.func @transform_0(%arg0: i32) -> (i32, i32) {
    %c0_i32 = arith.constant 0 : i32
    %c0_i32_0 = arith.constant 0 : i32
    return %arg0, %c0_i32 : i32, i32
  }
  func.func @transform_1(%arg0: i32) -> (i32, i32) {
    %c0_i32 = arith.constant 0 : i32
    %c0_i32_0 = arith.constant 0 : i32
    %c0_i32_1 = arith.constant 0 : i32
    return %c0_i32, %c0_i32_0 : i32, i32
  }
  func.func @transform_2(%arg0: i32) -> (i32, i32) {
    %c0_i32 = arith.constant 0 : i32
    %c0_i32_0 = arith.constant 0 : i32
    %c0_i32_1 = arith.constant 0 : i32
    return %c0_i32, %c0_i32_0 : i32, i32
  }
  func.func @transform_3(%arg0: i32) -> (i32, i32) {
    %c0_i32 = arith.constant 0 : i32
    %c0_i32_0 = arith.constant 0 : i32
    %c0_i32_1 = arith.constant 0 : i32
    return %c0_i32, %c0_i32_0 : i32, i32
  }
  func.func @transform_4(%arg0: i32) -> (i32, i32) {
    %c0_i32 = arith.constant 0 : i32
    %c0_i32_0 = arith.constant 0 : i32
    %c0_i32_1 = arith.constant 0 : i32
    return %c0_i32, %c0_i32_0 : i32, i32
  }
  func.func @transform_5(%arg0: i32) -> (i32, i32) {
    %c0_i32 = arith.constant 0 : i32
    %c0_i32_0 = arith.constant 0 : i32
    return %arg0, %c0_i32 : i32, i32
  }
}

</mosaic_0001>

<llo_original>
// kernel: tpu_custom_call.1
$region0: #{tpu_custom_call.1}
  #allocation0 [shape = 'u32[]', space=smem, size = 0x4, offset = 0x4, fixed_abs, tag = 'smem constant byte address 0x4 - core index']
  #allocation1 [shape = 'u32[144,128]{1,0:T(1,128)}', space=vmem, size = 0x12000, scoped, tag = 'internal scratch']
  %s0 = inlined_call_operand.vmem [shape: bf16[8,16], index: 0, kind: input, shape index: {}]
  %s1 = inlined_call_operand.vmem [shape: bf16[32,16], index: 1, kind: input, shape index: {}]
  %s2 = inlined_call_operand.vmem [shape: f32[1,32], index: 2, kind: input, shape index: {}]
  %s3 = inlined_call_operand.vmem [shape: bf16[128,32], index: 3, kind: input, shape index: {}]
  %s4 = inlined_call_operand.vmem [shape: f32[1,128], index: 4, kind: input, shape index: {}]
  %s5 = inlined_call_operand.hbm [shape: f32[8,128], index: 5, kind: output, shape index: {}]
  %s6 = sld [smem:[#allocation0]]
  $region30: #{tpu_custom_call.1} parent=0
    _
  %s8 = ssub.s32 1, %s6
  %s9 = scalar_select 0, %s8, %s6
  $region1: #{tpu_custom_call.1} parent=0
    #allocation2 [shape = 'u8[4096]{0}', space=vmem, size = 0x1000, scoped, tag = 'output window, operand 0, single buffered']
    #allocation3 [shape = 's32[1]{0}', space=sflag, size = 0x4, scoped, tag = 'scoped memory for tpu_custom_call.1']
    %10 = vsyncpa [#allocation3], 0
    // Predicated region
    $region2: #{tpu_custom_call.1} parent=1 // pred_check
      _
    $region3: #{tpu_custom_call.1} parent=1 // pred_check_branch
      %12 = sbr.rel (0) target = $region5
    $region4: #{tpu_custom_call.1} parent=1 // pred_region
      _
    $region5: #{tpu_custom_call.1} parent=1 // pred_fallthru
      _
    // Predicated region
    $region6: #{tpu_custom_call.1} parent=1 // pred_check
      _
    $region7: #{tpu_custom_call.1} parent=1 // pred_check_branch
      %14 = sbr.rel (0) target = $region9
    $region8: #{tpu_custom_call.1} parent=1 // pred_region
      _
    $region9: #{tpu_custom_call.1} parent=1 // pred_fallthru
      _
    // Predicated region
    $region10: #{tpu_custom_call.1} parent=1 // pred_check
      _
    $region11: #{tpu_custom_call.1} parent=1 // pred_check_branch
      %16 = sbr.rel (0) target = $region13
    $region12: #{tpu_custom_call.1} parent=1 // pred_region
      _
    $region13: #{tpu_custom_call.1} parent=1 // pred_fallthru
      _
    // Predicated region
    $region14: #{tpu_custom_call.1} parent=1 // pred_check
      _
    $region15: #{tpu_custom_call.1} parent=1 // pred_check_branch
      %18 = sbr.rel (0) target = $region17
    $region16: #{tpu_custom_call.1} parent=1 // pred_region
      _
    $region17: #{tpu_custom_call.1} parent=1 // pred_fallthru
      _
    // Predicated region
    $region18: #{tpu_custom_call.1} parent=1 // pred_check
      _
    $region19: #{tpu_custom_call.1} parent=1 // pred_check_branch
      %20 = sbr.rel (0) target = $region21
    $region20: #{tpu_custom_call.1} parent=1 // pred_region
      _
    $region21: #{tpu_custom_call.1} parent=1 // pred_fallthru
      _
    %v22 = vld [vmem:[%s0] sm:$0xf]
    %v23 = vld [vmem:[%s1] sm:$0xf]
    %v24 = vld [vmem:[%s1 + $0x4] sm:$0xf]
    %v25 = vld [vmem:[%s1 + $0x8] sm:$0xf]
    %v26 = vld [vmem:[%s1 + $0xc] sm:$0xf]
    %v27 = vld [vmem:[%s2] sm:$0x1]
    %v29 = vlaneseq
    %v30 = vshrl.u32 %v29, 7
    %v31 = vsub.s32 0, %v30
    %v32 = vrot.slane %v27, %v31
    %v38 = vunpack.c.l.b16 %v23
    %v39 = vunpack.c.l.b16 %v24
    %v40 = vunpack.c.l.b16 %v25
    %v41 = vunpack.c.l.b16 %v26
    %v42 = vpack.c.b16 %v39, %v38
    %v43 = vpack.c.b16 %v41, %v40
    %vm44 = vcmask 130048
    %v46 = vsel %vm44, %v22, 0
    %v49 = vsel %vm44, %v42, 0
    %v52 = vsel %vm44, %v43, 0
    %54 = vmatprep.subr.bf16.mxu0 0
    %55 = vmatpush1.bf16.xpose.msra.mxu0 %v49
    %56 = vmatprep.subr.bf16.mxu0 0
    %57 = vmatpush1.bf16.xpose.msra.mxu0 %v52
    %58 = vmatprep.subr.bf16.mxu0 0
    %59 = vmatpush1.bf16.xpose.msra.mxu0 0
    %60 = vmatprep.subr.bf16.mxu0 0
    %61 = vmatpush1.bf16.xpose.msra.mxu0 0
    %62 = vmatprep.subr.bf16.mxu0 0
    %63 = vmatpush1.bf16.xpose.msra.mxu0 0
    %64 = vmatprep.subr.bf16.mxu0 0
    %65 = vmatpush1.bf16.xpose.msra.mxu0 0
    %66 = vmatprep.subr.bf16.mxu0 0
    %67 = vmatpush1.bf16.xpose.msra.mxu0 0
    %68 = vmatprep.subr.bf16.mxu0 0
    %69 = vmatpush1.bf16.xpose.msra.mxu0 0
    %70 = vmatprep.subr.bf16.mxu0 0
    %71 = vmatpush1.bf16.xpose.msra.mxu0 0
    %72 = vmatprep.subr.bf16.mxu0 0
    %73 = vmatpush1.bf16.xpose.msra.mxu0 0
    %74 = vmatprep.subr.bf16.mxu0 0
    %75 = vmatpush1.bf16.xpose.msra.mxu0 0
    %76 = vmatprep.subr.bf16.mxu0 0
    %77 = vmatpush1.bf16.xpose.msra.mxu0 0
    %78 = vmatprep.subr.bf16.mxu0 0
    %79 = vmatpush1.bf16.xpose.msra.mxu0 0
    %80 = vmatprep.subr.bf16.mxu0 0
    %81 = vmatpush1.bf16.xpose.msra.mxu0 0
    %82 = vmatprep.subr.bf16.mxu0 0
    %83 = vmatpush1.bf16.xpose.msra.mxu0 0
    %84 = vmatprep.subr.bf16.mxu0 0
    %85 = vmatpush1.bf16.xpose.msra.mxu0 0
    %86 = vmatprep.mubr.bf16.mxu0 0
    %87 = vmatmul.mubr.bf16.gmra.mrb[0].mxu0 %v46
    %v88 = vpop.f32.mrb[0].mxu0
    %v89 = vadd.f32 %v32, %v88
    %v90 = vpop.f32.mrb[0].mxu0
    %v91 = vpop.f32.mrb[0].mxu0
    %v92 = vpop.f32.mrb[0].mxu0
    %93 = vdwg.mxu0
    %v94 = vmax.f32 %v89, 0.0
    %v95 = vpack.c.bf16 %v94, %v94
    %v96 = vld [vmem:[%s3] sm:$0xf]
    %v97 = vld [vmem:[%s3 + $0x4] sm:$0xf]
    %v98 = vld [vmem:[%s3 + $0x8] sm:$0xf]
    %v99 = vld [vmem:[%s3 + $0xc] sm:$0xf]
    %v100 = vld [vmem:[%s3 + $0x10] sm:$0xf]
    %v101 = vld [vmem:[%s3 + $0x14] sm:$0xf]
    %v102 = vld [vmem:[%s3 + $0x18] sm:$0xf]
    %v103 = vld [vmem:[%s3 + $0x1c] sm:$0xf]
    %v104 = vld [vmem:[%s3 + $0x20] sm:$0xf]
    %v105 = vld [vmem:[%s3 + $0x24] sm:$0xf]
    %v106 = vld [vmem:[%s3 + $0x28] sm:$0xf]
    %v107 = vld [vmem:[%s3 + $0x2c] sm:$0xf]
    %v108 = vld [vmem:[%s3 + $0x30] sm:$0xf]
    %v109 = vld [vmem:[%s3 + $0x34] sm:$0xf]
    %v110 = vld [vmem:[%s3 + $0x38] sm:$0xf]
    %v111 = vld [vmem:[%s3 + $0x3c] sm:$0xf]
    %v112 = vld [vmem:[%s4] sm:$0x1]
    %v114 = vlaneseq
    %v115 = vshrl.u32 %v114, 7
    %v116 = vsub.s32 0, %v115
    %v117 = vrot.slane %v112, %v116
    %v135 = vunpack.c.l.b16 %v96
    %v136 = vunpack.c.l.b16 %v97
    %v137 = vunpack.c.l.b16 %v98
    %v138 = vunpack.c.l.b16 %v99
    %v139 = vunpack.c.l.b16 %v100
    %v140 = vunpack.c.l.b16 %v101
    %v141 = vunpack.c.l.b16 %v102
    %v142 = vunpack.c.l.b16 %v103
    %v143 = vunpack.c.l.b16 %v104
    %v144 = vunpack.c.l.b16 %v105
    %v145 = vunpack.c.l.b16 %v106
    %v146 = vunpack.c.l.b16 %v107
    %v147 = vunpack.c.l.b16 %v108
    %v148 = vunpack.c.l.b16 %v109
    %v149 = vunpack.c.l.b16 %v110
    %v150 = vunpack.c.l.b16 %v111
    %v151 = vpack.c.b16 %v136, %v135
    %v152 = vpack.c.b16 %v138, %v137
    %v153 = vpack.c.b16 %v140, %v139
    %v154 = vpack.c.b16 %v142, %v141
    %v155 = vpack.c.b16 %v144, %v143
    %v156 = vpack.c.b16 %v146, %v145
    %v157 = vpack.c.b16 %v148, %v147
    %v158 = vpack.c.b16 %v150, %v149
    %vm159 = vcmask 261120
    %v161 = vsel %vm159, %v95, 0
    %v164 = vsel %vm159, %v151, 0
    %v167 = vsel %vm159, %v152, 0
    %v170 = vsel %vm159, %v153, 0
    %v173 = vsel %vm159, %v154, 0
    %v176 = vsel %vm159, %v155, 0
    %v179 = vsel %vm159, %v156, 0
    %v182 = vsel %vm159, %v157, 0
    %v185 = vsel %vm159, %v158, 0
    %187 = vmatprep.subr.bf16.mxu0 0
    %188 = vmatpush1.bf16.xpose.msra.mxu0 %v164
    %189 = vmatprep.subr.bf16.mxu0 0
    %190 = vmatpush1.bf16.xpose.msra.mxu0 %v167
    %191 = vmatprep.subr.bf16.mxu0 0
    %192 = vmatpush1.bf16.xpose.msra.mxu0 %v170
    %193 = vmatprep.subr.bf16.mxu0 0
    %194 = vmatpush1.bf16.xpose.msra.mxu0 %v173
    %195 = vmatprep.subr.bf16.mxu0 0
    %196 = vmatpush1.bf16.xpose.msra.mxu0 %v176
    %197 = vmatprep.subr.bf16.mxu0 0
    %198 = vmatpush1.bf16.xpose.msra.mxu0 %v179
    %199 = vmatprep.subr.bf16.mxu0 0
    %200 = vmatpush1.bf16.xpose.msra.mxu0 %v182
    %201 = vmatprep.subr.bf16.mxu0 0
    %202 = vmatpush1.bf16.xpose.msra.mxu0 %v185
    %203 = vmatprep.subr.bf16.mxu0 0
    %204 = vmatpush1.bf16.xpose.msra.mxu0 0
    %205 = vmatprep.subr.bf16.mxu0 0
    %206 = vmatpush1.bf16.xpose.msra.mxu0 0
    %207 = vmatprep.subr.bf16.mxu0 0
    %208 = vmatpush1.bf16.xpose.msra.mxu0 0
    %209 = vmatprep.subr.bf16.mxu0 0
    %210 = vmatpush1.bf16.xpose.msra.mxu0 0
    %211 = vmatprep.subr.bf16.mxu0 0
    %212 = vmatpush1.bf16.xpose.msra.mxu0 0
    %213 = vmatprep.subr.bf16.mxu0 0
    %214 = vmatpush1.bf16.xpose.msra.mxu0 0
    %215 = vmatprep.subr.bf16.mxu0 0
    %216 = vmatpush1.bf16.xpose.msra.mxu0 0
    %217 = vmatprep.subr.bf16.mxu0 0
    %218 = vmatpush1.bf16.xpose.msra.mxu0 0
    %219 = vmatprep.mubr.bf16.mxu0 0
    %220 = vmatmul.mubr.bf16.gmra.mrb[0].mxu0 %v161
    %v221 = vpop.f32.mrb[0].mxu0
    %v222 = vadd.f32 %v117, %v221
    %v223 = vpop.f32.mrb[0].mxu0
    %v224 = vpop.f32.mrb[0].mxu0
    %v225 = vpop.f32.mrb[0].mxu0
    %226 = vdwg.mxu0
    %227 = vst [vmem:[#allocation2] sm:$0xff] %v222
    // Predicated region
    $region22: #{tpu_custom_call.1} parent=1 // pred_check
      _
    $region23: #{tpu_custom_call.1} parent=1 // pred_check_branch
      %229 = sbr.rel (0) target = $region25
    $region24: #{tpu_custom_call.1} parent=1 // pred_region
      %s231 = ssub.s32 128, 128
      %232 = vsyncadd [#allocation3], %s231
      %s234 = sshll.u32 [#allocation2], 4
      %s235 = int_to_ptr.vmem [resolvable:$true] %s234
      %237 = dma.vmem_to_hbm [thread:$0]  %s235, 128, %s5, [#allocation3]
    $region25: #{tpu_custom_call.1} parent=1 // pred_fallthru
      _
    // Predicated region
    $region26: #{tpu_custom_call.1} parent=1 // pred_check
      _
    $region27: #{tpu_custom_call.1} parent=1 // pred_check_branch
      %239 = sbr.rel (0) target = $region29
    $region28: #{tpu_custom_call.1} parent=1 // pred_region
      %240 = dma.done [#allocation3], 128
    $region29: #{tpu_custom_call.1} parent=1 // pred_fallthru
      _
    %241 = vsyncpa [#allocation3], 1

</llo_original>
